<compile_context>
chip_gen: v5e
topology: v5e:2x2
jax: 0.10.0
libtpu: 0.0.40
codegen_flags: <defaults>
</compile_context>

<pallas_src>
import math

import jax
import jax.numpy as jnp
import numpy as np
from jax import lax
from jax.experimental import pallas as pl
from jax.experimental.pallas import tpu as pltpu

# ----------------------------- model config ---------------------------------
B = 2          # batch
S = 8          # sequence length
D = 32         # d_model
H = 4          # num_heads
DK = D // H    # d_k = 8
DFF = 256      # feed-forward hidden
N = B * S      # token rows processed in one kernel invocation
EPS = 1e-6

# Packed parameter-buffer layout (single (PROWS, PLANES) f32 array):
#   rows 0:D      lanes 0:3D        -> wqkv  ([wq|wk|wv], (D,3D))
#   rows 0:D      lanes 3D:4D       -> wo    (D,D)
#   rows 0:D      lanes 4D:4D+DFF   -> w1    (D,DFF)
#   rows D:D+N    lanes 0:N         -> block-diagonal batch mask (N,N) {0,1}
#   row  D+N      lanes 0:9D        -> bqkv | bo | g1 | be1 | b2 | g2 | be2
#   row  D+N+1    lanes 0:DFF       -> b1
PLANES = 4 * D + DFF      # 384
PROWS = D + N + 2         # 50
SMALL_ROW = D + N         # 48
B1_ROW = D + N + 1        # 49


# ------------------------- layernorm helpers ---------------------------------
def _layer_norm_ref(x, gamma, beta, eps=EPS):
    # Pure-JAX reference: unbiased std, eps added to std (as in the PyTorch module).
    mean = jnp.mean(x, axis=-1, keepdims=True)
    var = jnp.sum((x - mean) ** 2, axis=-1, keepdims=True) / (x.shape[-1] - 1)
    std = jnp.sqrt(var)
    return gamma * (x - mean) / (std + eps) + beta


def _layer_norm_kernel(x, gamma, beta):
    # Kernel version: same math, inverse as one EUP rsqrt (eps folded out;
    # relative perturbation ~eps/std ~ 1e-6 -> inside the 1e-4 tolerance).
    d = x.shape[-1]
    mean = jnp.sum(x, axis=-1, keepdims=True) * (1.0 / d)
    xc = x - mean
    var = jnp.sum(xc * xc, axis=-1, keepdims=True) * (1.0 / (d - 1))
    return gamma * xc * lax.rsqrt(var) + beta


# ------------------------------- kernel --------------------------------------
def encoder_layer_kernel(x_ref, p_ref, w2_ref, o_ref):
    x = x_ref[...]                                          # (N, D) = (16, 32)

    # ---- static slices of the packed parameter buffer (VMEM, cheap) --------
    wqkv = p_ref[0:D, 0:3 * D]                              # (32, 96)
    wo = p_ref[0:D, 3 * D:4 * D]                            # (32, 32)
    w1 = p_ref[0:D, 4 * D:4 * D + DFF]                      # (32, 256)
    mask = p_ref[D:D + N, 0:N]                              # (16, 16) {0,1}
    r = SMALL_ROW
    bqkv = p_ref[r:r + 1, 0:3 * D]                          # (1, 96)
    bo = p_ref[r:r + 1, 3 * D:4 * D]
    g1 = p_ref[r:r + 1, 4 * D:5 * D]
    be1 = p_ref[r:r + 1, 5 * D:6 * D]
    b2 = p_ref[r:r + 1, 6 * D:7 * D]
    g2 = p_ref[r:r + 1, 7 * D:8 * D]
    be2 = p_ref[r:r + 1, 8 * D:9 * D]
    b1 = p_ref[B1_ROW:B1_ROW + 1, 0:DFF]                    # (1, 256)

    # ---- fused QKV projection, single fused bias add ------------------------
    qkv = jnp.dot(x, wqkv, preferred_element_type=jnp.float32) + bqkv   # (16, 96)

    # q in head-major (H, N, DK) layout: 4 lane slices + 1 stack.
    q = qkv[:, 0:D]
    q_h = jnp.stack([q[:, h * DK:(h + 1) * DK] for h in range(H)], axis=0)

    # k, v head split via ONE 2-D transpose; the per-head splits are then
    # sublane-tile-aligned slices (free) instead of 8 narrow lane slices.
    kvT = jnp.transpose(qkv[:, D:3 * D])                    # (2D, N) = (64, 16)
    kT_h = jnp.stack([kvT[h * DK:(h + 1) * DK] for h in range(H)], axis=0)       # (H,DK,N)
    vT_h = jnp.stack([kvT[D + h * DK:D + (h + 1) * DK] for h in range(H)], axis=0)

    # ---- attention -----------------------------------------------------------
    scale = 1.0 / math.sqrt(DK)
    s = jnp.einsum("hqd,hdk->hqk", q_h, kT_h,
                   preferred_element_type=jnp.float32) * scale          # (H, N, N)

    # Softmax over the HEAD dimension (matches F.softmax(scores, dim=1)).
    m = jnp.max(s, axis=0, keepdims=True)
    p = jnp.exp(s - m)
    denom = jnp.sum(p, axis=0, keepdims=True)                           # (1, N, N)
    # Exact reciprocal (tolerance) with the precomputed block-diagonal batch
    # mask folded into the (1,N,N) factor: the (H,N,N) tensor is touched once.
    attn = p * (pl.reciprocal(denom, approx=False) * mask[None, :, :])

    ctx = jnp.einsum("hqk,hdk->hqd", attn, vT_h,
                     preferred_element_type=jnp.float32)                # (H, N, DK)
    ctx_cat = jnp.concatenate([ctx[h] for h in range(H)], axis=-1)      # (N, D)

    attn_out = jnp.dot(ctx_cat, wo, preferred_element_type=jnp.float32) + bo

    # Residual + LayerNorm (attention block).
    x1 = _layer_norm_kernel(attn_out + x, g1, be1)

    # FeedForward: linear1 -> relu -> linear2, residual, LayerNorm.
    h1 = jnp.maximum(
        jnp.dot(x1, w1, preferred_element_type=jnp.float32) + b1, 0.0)
    h2 = jnp.dot(h1, w2_ref[...], preferred_element_type=jnp.float32) + b2
    o_ref[...] = _layer_norm_kernel(h2 + x1, g2, be2)


# ------------------------------ wrapper ---------------------------------------
def pack_params(params):
    (wq, bq, wk, bk, wv, bv, wo, bo, g1, be1, w1, b1, w2, b2, g2, be2) = params
    pbuf = jnp.zeros((PROWS, PLANES), jnp.float32)
    pbuf = pbuf.at[0:D, 0:3 * D].set(jnp.concatenate([wq, wk, wv], axis=1))
    pbuf = pbuf.at[0:D, 3 * D:4 * D].set(wo)
    pbuf = pbuf.at[0:D, 4 * D:4 * D + DFF].set(w1)
    # Block-diagonal batch mask: token row n belongs to batch n // S.
    row_batch = jnp.arange(N) // S
    mask = (row_batch[:, None] == row_batch[None, :]).astype(jnp.float32)
    pbuf = pbuf.at[D:D + N, 0:N].set(mask)
    small = jnp.concatenate([bq, bk, bv, bo, g1, be1, b2, g2, be2], axis=1)  # (1, 288)
    pbuf = pbuf.at[SMALL_ROW, 0:small.shape[1]].set(small[0])
    pbuf = pbuf.at[B1_ROW, 0:DFF].set(b1[0])
    return pbuf, w2


def transformer_encoder_layer(x, packed):
    pbuf, w2 = packed
    x2 = x.reshape(N, D)   # (B*S, D) — lane layout unchanged, free reshape

    flops = (2 * N * D * (3 * D)          # fused QKV
             + 2 * H * N * N * DK * 2     # scores + attn@v
             + 2 * N * D * D              # output projection
             + 2 * N * D * DFF * 2)       # FFN
    bytes_accessed = 4 * (x2.size + pbuf.size + w2.size + N * D)
    transcendentals = H * N * N + N * N + 2 * N   # exps + recips + rsqrts

    vmem = lambda: pl.BlockSpec(memory_space=pltpu.MemorySpace.VMEM)
    out = pl.pallas_call(
        encoder_layer_kernel,
        out_shape=jax.ShapeDtypeStruct((N, D), jnp.float32),
        in_specs=[vmem(), vmem(), vmem()],
        out_specs=vmem(),
        cost_estimate=pl.CostEstimate(
            flops=flops,
            transcendentals=transcendentals,
            bytes_accessed=bytes_accessed),
    )(x2, pbuf, w2)
    return out.reshape(B, S, D)


# ------------------------------ reference (pure JAX) --------------------------
def reference(x, params):
    (wq, bq, wk, bk, wv, bv, wo, bo, g1, be1, w1, b1, w2, b2, g2, be2) = params
    Bb, Ss, Dd = x.shape

    q = x @ wq + bq
    k = x @ wk + bk
    v = x @ wv + bv
    q = q.reshape(Bb, Ss, H, DK).transpose(0, 2, 1, 3)
    k = k.reshape(Bb, Ss, H, DK).transpose(0, 2, 1, 3)
    v = v.reshape(Bb, Ss, H, DK).transpose(0, 2, 1, 3)
    scores = jnp.einsum("bhqd,bhkd->bhqk", q, k) / jnp.sqrt(jnp.float32(DK))
    attn = jax.nn.softmax(scores, axis=1)  # matches F.softmax(scores, dim=1)
    out = jnp.einsum("bhqk,bhkd->bhqd", attn, v)
    out = out.transpose(0, 2, 1, 3).reshape(Bb, Ss, Dd)
    o = out @ wo + bo
    x1 = _layer_norm_ref(o + x, g1, be1)
    h1 = jax.nn.relu(x1 @ w1 + b1)
    h2 = h1 @ w2 + b2
    return _layer_norm_ref(h2 + x1, g2, be2)


# ------------------------------ param init ------------------------------------
def init_params(key):
    ks = jax.random.split(key, 8)
    sc = 0.1
    wq = sc * jax.random.normal(ks[0], (D, D), jnp.float32)
    wk = sc * jax.random.normal(ks[1], (D, D), jnp.float32)
    wv = sc * jax.random.normal(ks[2], (D, D), jnp.float32)
    wo = sc * jax.random.normal(ks[3], (D, D), jnp.float32)
    bq = sc * jax.random.normal(ks[4], (1, D), jnp.float32)
    bk = sc * jax.random.normal(ks[5], (1, D), jnp.float32)
    bv = sc * jax.random.normal(ks[6], (1, D), jnp.float32)
    bo = sc * jax.random.normal(ks[7], (1, D), jnp.float32)
    g1 = jnp.ones((1, D), jnp.float32)
    be1 = jnp.zeros((1, D), jnp.float32)
    k2 = jax.random.split(jax.random.fold_in(key, 1), 4)
    w1 = sc * jax.random.normal(k2[0], (D, DFF), jnp.float32)
    b1 = sc * jax.random.normal(k2[1], (1, DFF), jnp.float32)
    w2 = sc * jax.random.normal(k2[2], (DFF, D), jnp.float32)
    b2 = sc * jax.random.normal(k2[3], (1, D), jnp.float32)
    g2 = jnp.ones((1, D), jnp.float32)
    be2 = jnp.zeros((1, D), jnp.float32)
    return (wq, bq, wk, bk, wv, bv, wo, bo, g1, be1, w1, b1, w2, b2, g2, be2)


if __name__ == "__main__":
    key = jax.random.PRNGKey(0)
    kx, kp = jax.random.split(key)
    x = jax.random.normal(kx, (B, S, D), jnp.float32)
    params = init_params(kp)
    packed = pack_params(params)

    out = transformer_encoder_layer(x, packed)
    out = jax.block_until_ready(out)

    ref = jax.block_until_ready(reference(x, params))
    np.testing.assert_allclose(np.asarray(out), np.asarray(ref),
                               rtol=1e-4, atol=1e-4)

    # TODO(synk): embedding lookup, mean-pool and the final classifier Linear of
    # TransformerClassifier are left to plain XLA (gather + tiny GEMV); only the
    # TransformerEncoderLayer core is a Pallas kernel.
    print("KERNEL_OK")
</pallas_src>

<mosaic_0001>
module attributes {stable_mosaic.version = 11 : i64} {
  func.func @encoder_layer_kernel(%arg0: memref<16x32xf32, #tpu.memory_space<vmem>>, %arg1: memref<50x384xf32, #tpu.memory_space<vmem>>, %arg2: memref<256x32xf32, #tpu.memory_space<vmem>>, %arg3: memref<16x32xf32, #tpu.memory_space<vmem>>) attributes {dimension_semantics = [], scalar_prefetch = 0 : i64, scratch_operands = 0 : i64, tpu.core_type = #tpu.core_type<tc>} {
    %c0 = arith.constant 0 : index
    %c0_0 = arith.constant 0 : index
    %0 = vector.load %arg0[%c0, %c0_0] : memref<16x32xf32, #tpu.memory_space<vmem>>, vector<16x32xf32>
    %c0_1 = arith.constant 0 : index
    %c0_2 = arith.constant 0 : index
    %1 = vector.load %arg1[%c0_1, %c0_2] : memref<50x384xf32, #tpu.memory_space<vmem>>, vector<32x96xf32>
    %c0_3 = arith.constant 0 : index
    %c96 = arith.constant 96 : index
    %2 = vector.load %arg1[%c0_3, %c96] : memref<50x384xf32, #tpu.memory_space<vmem>>, vector<32x32xf32>
    %c0_4 = arith.constant 0 : index
    %c128 = arith.constant 128 : index
    %3 = vector.load %arg1[%c0_4, %c128] : memref<50x384xf32, #tpu.memory_space<vmem>>, vector<32x256xf32>
    %c32 = arith.constant 32 : index
    %c0_5 = arith.constant 0 : index
    %4 = vector.load %arg1[%c32, %c0_5] : memref<50x384xf32, #tpu.memory_space<vmem>>, vector<16x16xf32>
    %c48 = arith.constant 48 : index
    %c0_6 = arith.constant 0 : index
    %5 = vector.load %arg1[%c48, %c0_6] : memref<50x384xf32, #tpu.memory_space<vmem>>, vector<1x96xf32>
    %c48_7 = arith.constant 48 : index
    %c96_8 = arith.constant 96 : index
    %6 = vector.load %arg1[%c48_7, %c96_8] : memref<50x384xf32, #tpu.memory_space<vmem>>, vector<1x32xf32>
    %c48_9 = arith.constant 48 : index
    %c128_10 = arith.constant 128 : index
    %7 = vector.load %arg1[%c48_9, %c128_10] : memref<50x384xf32, #tpu.memory_space<vmem>>, vector<1x32xf32>
    %c48_11 = arith.constant 48 : index
    %c160 = arith.constant 160 : index
    %8 = vector.load %arg1[%c48_11, %c160] : memref<50x384xf32, #tpu.memory_space<vmem>>, vector<1x32xf32>
    %c48_12 = arith.constant 48 : index
    %c192 = arith.constant 192 : index
    %9 = vector.load %arg1[%c48_12, %c192] : memref<50x384xf32, #tpu.memory_space<vmem>>, vector<1x32xf32>
    %c48_13 = arith.constant 48 : index
    %c224 = arith.constant 224 : index
    %10 = vector.load %arg1[%c48_13, %c224] : memref<50x384xf32, #tpu.memory_space<vmem>>, vector<1x32xf32>
    %c48_14 = arith.constant 48 : index
    %c256 = arith.constant 256 : index
    %11 = vector.load %arg1[%c48_14, %c256] : memref<50x384xf32, #tpu.memory_space<vmem>>, vector<1x32xf32>
    %c49 = arith.constant 49 : index
    %c0_15 = arith.constant 0 : index
    %12 = vector.load %arg1[%c49, %c0_15] : memref<50x384xf32, #tpu.memory_space<vmem>>, vector<1x256xf32>
    %cst = arith.constant dense<0.000000e+00> : vector<16x96xf32>
    %13 = tpu.matmul %0, %1, %cst {dimension_numbers = #tpu.dot_dimension_numbers<[1], [0], [0], [1], [0, 0, 1, 1], [], []>} : vector<16x32xf32>, vector<32x96xf32>, vector<16x96xf32> -> vector<16x96xf32>
    %14 = vector.broadcast %5 : vector<1x96xf32> to vector<16x96xf32>
    %15 = arith.addf %13, %14 : vector<16x96xf32>
    %16 = vector.extract_strided_slice %15 {offsets = [0, 0], sizes = [16, 32], strides = [1, 1]} : vector<16x96xf32> to vector<16x32xf32>
    %17 = vector.extract_strided_slice %16 {offsets = [0, 0], sizes = [16, 8], strides = [1, 1]} : vector<16x32xf32> to vector<16x8xf32>
    %18 = vector.extract_strided_slice %16 {offsets = [0, 8], sizes = [16, 8], strides = [1, 1]} : vector<16x32xf32> to vector<16x8xf32>
    %19 = vector.extract_strided_slice %16 {offsets = [0, 16], sizes = [16, 8], strides = [1, 1]} : vector<16x32xf32> to vector<16x8xf32>
    %20 = vector.extract_strided_slice %16 {offsets = [0, 24], sizes = [16, 8], strides = [1, 1]} : vector<16x32xf32> to vector<16x8xf32>
    %21 = vector.shape_cast %17 : vector<16x8xf32> to vector<1x16x8xf32>
    %22 = vector.shape_cast %18 : vector<16x8xf32> to vector<1x16x8xf32>
    %23 = vector.shape_cast %19 : vector<16x8xf32> to vector<1x16x8xf32>
    %24 = vector.shape_cast %20 : vector<16x8xf32> to vector<1x16x8xf32>
    %25 = tpu.concatenate %21, %22, %23, %24 in 0 : vector<1x16x8xf32>, vector<1x16x8xf32>, vector<1x16x8xf32>, vector<1x16x8xf32> -> vector<4x16x8xf32>
    %26 = vector.extract_strided_slice %15 {offsets = [0, 32], sizes = [16, 64], strides = [1, 1]} : vector<16x96xf32> to vector<16x64xf32>
    %27 = tpu.transpose %26, [1, 0] : vector<16x64xf32> -> vector<64x16xf32>
    %28 = vector.extract_strided_slice %27 {offsets = [0, 0], sizes = [8, 16], strides = [1, 1]} : vector<64x16xf32> to vector<8x16xf32>
    %29 = vector.extract_strided_slice %27 {offsets = [8, 0], sizes = [8, 16], strides = [1, 1]} : vector<64x16xf32> to vector<8x16xf32>
    %30 = vector.extract_strided_slice %27 {offsets = [16, 0], sizes = [8, 16], strides = [1, 1]} : vector<64x16xf32> to vector<8x16xf32>
    %31 = vector.extract_strided_slice %27 {offsets = [24, 0], sizes = [8, 16], strides = [1, 1]} : vector<64x16xf32> to vector<8x16xf32>
    %32 = vector.shape_cast %28 : vector<8x16xf32> to vector<1x8x16xf32>
    %33 = vector.shape_cast %29 : vector<8x16xf32> to vector<1x8x16xf32>
    %34 = vector.shape_cast %30 : vector<8x16xf32> to vector<1x8x16xf32>
    %35 = vector.shape_cast %31 : vector<8x16xf32> to vector<1x8x16xf32>
    %36 = tpu.concatenate %32, %33, %34, %35 in 0 : vector<1x8x16xf32>, vector<1x8x16xf32>, vector<1x8x16xf32>, vector<1x8x16xf32> -> vector<4x8x16xf32>
    %37 = vector.extract_strided_slice %27 {offsets = [32, 0], sizes = [8, 16], strides = [1, 1]} : vector<64x16xf32> to vector<8x16xf32>
    %38 = vector.extract_strided_slice %27 {offsets = [40, 0], sizes = [8, 16], strides = [1, 1]} : vector<64x16xf32> to vector<8x16xf32>
    %39 = vector.extract_strided_slice %27 {offsets = [48, 0], sizes = [8, 16], strides = [1, 1]} : vector<64x16xf32> to vector<8x16xf32>
    %40 = vector.extract_strided_slice %27 {offsets = [56, 0], sizes = [8, 16], strides = [1, 1]} : vector<64x16xf32> to vector<8x16xf32>
    %41 = vector.shape_cast %37 : vector<8x16xf32> to vector<1x8x16xf32>
    %42 = vector.shape_cast %38 : vector<8x16xf32> to vector<1x8x16xf32>
    %43 = vector.shape_cast %39 : vector<8x16xf32> to vector<1x8x16xf32>
    %44 = vector.shape_cast %40 : vector<8x16xf32> to vector<1x8x16xf32>
    %45 = tpu.concatenate %41, %42, %43, %44 in 0 : vector<1x8x16xf32>, vector<1x8x16xf32>, vector<1x8x16xf32>, vector<1x8x16xf32> -> vector<4x8x16xf32>
    "tpu.trace_start"() <{level = 10 : i32, message = "hqd,hdk->hqk"}> : () -> ()
    %cst_16 = arith.constant dense<0.000000e+00> : vector<4x16x16xf32>
    %46 = tpu.matmul %25, %36, %cst_16 {dimension_numbers = #tpu.dot_dimension_numbers<[2], [1], [1], [2], [0, 0, 0, 1, 1, 2], [0], [0]>} : vector<4x16x8xf32>, vector<4x8x16xf32>, vector<4x16x16xf32> -> vector<4x16x16xf32>
    "tpu.trace_stop"() : () -> ()
    %cst_17 = arith.constant 0.353553385 : f32
    %47 = vector.broadcast %cst_17 : f32 to vector<4x16x16xf32>
    %48 = arith.mulf %46, %47 : vector<4x16x16xf32>
    %cst_18 = arith.constant dense<0xFF800000> : vector<16x16xf32>
    %49 = vector.multi_reduction <maximumf>, %48, %cst_18 [0] : vector<4x16x16xf32> to vector<16x16xf32>
    %50 = vector.shape_cast %49 : vector<16x16xf32> to vector<1x16x16xf32>
    %51 = vector.broadcast %50 : vector<1x16x16xf32> to vector<4x16x16xf32>
    %52 = arith.subf %48, %51 : vector<4x16x16xf32>
    %53 = math.exp %52 : vector<4x16x16xf32>
    %cst_19 = arith.constant dense<0.000000e+00> : vector<16x16xf32>
    %54 = vector.multi_reduction <add>, %53, %cst_19 [0] : vector<4x16x16xf32> to vector<16x16xf32>
    %55 = vector.shape_cast %54 : vector<16x16xf32> to vector<1x16x16xf32>
    %56 = tpu.reciprocal %55 : vector<1x16x16xf32> -> vector<1x16x16xf32>
    %57 = vector.shape_cast %4 : vector<16x16xf32> to vector<1x16x16xf32>
    %58 = arith.mulf %56, %57 : vector<1x16x16xf32>
    %59 = vector.broadcast %58 : vector<1x16x16xf32> to vector<4x16x16xf32>
    %60 = arith.mulf %53, %59 : vector<4x16x16xf32>
    "tpu.trace_start"() <{level = 10 : i32, message = "hqk,hdk->hqd"}> : () -> ()
    %cst_20 = arith.constant dense<0.000000e+00> : vector<4x16x8xf32>
    %61 = tpu.matmul %60, %45, %cst_20 {dimension_numbers = #tpu.dot_dimension_numbers<[2], [2], [1], [1], [0, 0, 0, 1, 1, 1], [0], [0]>} : vector<4x16x16xf32>, vector<4x8x16xf32>, vector<4x16x8xf32> -> vector<4x16x8xf32>
    "tpu.trace_stop"() : () -> ()
    %62 = vector.extract_strided_slice %61 {offsets = [0, 0, 0], sizes = [1, 16, 8], strides = [1, 1, 1]} : vector<4x16x8xf32> to vector<1x16x8xf32>
    %63 = vector.shape_cast %62 : vector<1x16x8xf32> to vector<16x8xf32>
    %64 = vector.extract_strided_slice %61 {offsets = [1, 0, 0], sizes = [1, 16, 8], strides = [1, 1, 1]} : vector<4x16x8xf32> to vector<1x16x8xf32>
    %65 = vector.shape_cast %64 : vector<1x16x8xf32> to vector<16x8xf32>
    %66 = vector.extract_strided_slice %61 {offsets = [2, 0, 0], sizes = [1, 16, 8], strides = [1, 1, 1]} : vector<4x16x8xf32> to vector<1x16x8xf32>
    %67 = vector.shape_cast %66 : vector<1x16x8xf32> to vector<16x8xf32>
    %68 = vector.extract_strided_slice %61 {offsets = [3, 0, 0], sizes = [1, 16, 8], strides = [1, 1, 1]} : vector<4x16x8xf32> to vector<1x16x8xf32>
    %69 = vector.shape_cast %68 : vector<1x16x8xf32> to vector<16x8xf32>
    %70 = tpu.concatenate %63, %65, %67, %69 in 1 : vector<16x8xf32>, vector<16x8xf32>, vector<16x8xf32>, vector<16x8xf32> -> vector<16x32xf32>
    %cst_21 = arith.constant dense<0.000000e+00> : vector<16x32xf32>
    %71 = tpu.matmul %70, %2, %cst_21 {dimension_numbers = #tpu.dot_dimension_numbers<[1], [0], [0], [1], [0, 0, 1, 1], [], []>} : vector<16x32xf32>, vector<32x32xf32>, vector<16x32xf32> -> vector<16x32xf32>
    %72 = vector.broadcast %6 : vector<1x32xf32> to vector<16x32xf32>
    %73 = arith.addf %71, %72 : vector<16x32xf32>
    %74 = arith.addf %73, %0 : vector<16x32xf32>
    %cst_22 = arith.constant dense<0.000000e+00> : vector<16xf32>
    %75 = vector.multi_reduction <add>, %74, %cst_22 [1] : vector<16x32xf32> to vector<16xf32>
    %76 = vector.shape_cast %75 : vector<16xf32> to vector<16x1xf32>
    %cst_23 = arith.constant 3.125000e-02 : f32
    %77 = vector.broadcast %cst_23 : f32 to vector<16x1xf32>
    %78 = arith.mulf %76, %77 : vector<16x1xf32>
    %79 = vector.broadcast %78 : vector<16x1xf32> to vector<16x32xf32>
    %80 = arith.subf %74, %79 : vector<16x32xf32>
    %81 = arith.mulf %80, %80 : vector<16x32xf32>
    %cst_24 = arith.constant dense<0.000000e+00> : vector<16xf32>
    %82 = vector.multi_reduction <add>, %81, %cst_24 [1] : vector<16x32xf32> to vector<16xf32>
    %83 = vector.shape_cast %82 : vector<16xf32> to vector<16x1xf32>
    %cst_25 = arith.constant 0.0322580636 : f32
    %84 = vector.broadcast %cst_25 : f32 to vector<16x1xf32>
    %85 = arith.mulf %83, %84 : vector<16x1xf32>
    %86 = vector.broadcast %7 : vector<1x32xf32> to vector<16x32xf32>
    %87 = arith.mulf %86, %80 : vector<16x32xf32>
    %88 = math.rsqrt %85 : vector<16x1xf32>
    %89 = vector.broadcast %88 : vector<16x1xf32> to vector<16x32xf32>
    %90 = arith.mulf %87, %89 : vector<16x32xf32>
    %91 = vector.broadcast %8 : vector<1x32xf32> to vector<16x32xf32>
    %92 = arith.addf %90, %91 : vector<16x32xf32>
    %cst_26 = arith.constant dense<0.000000e+00> : vector<16x256xf32>
    %93 = tpu.matmul %92, %3, %cst_26 {dimension_numbers = #tpu.dot_dimension_numbers<[1], [0], [0], [1], [0, 0, 1, 1], [], []>} : vector<16x32xf32>, vector<32x256xf32>, vector<16x256xf32> -> vector<16x256xf32>
    %94 = vector.broadcast %12 : vector<1x256xf32> to vector<16x256xf32>
    %95 = arith.addf %93, %94 : vector<16x256xf32>
    %cst_27 = arith.constant 0.000000e+00 : f32
    %96 = vector.broadcast %cst_27 : f32 to vector<16x256xf32>
    %97 = arith.maximumf %95, %96 : vector<16x256xf32>
    %c0_28 = arith.constant 0 : index
    %c0_29 = arith.constant 0 : index
    %98 = vector.load %arg2[%c0_28, %c0_29] : memref<256x32xf32, #tpu.memory_space<vmem>>, vector<256x32xf32>
    %cst_30 = arith.constant dense<0.000000e+00> : vector<16x32xf32>
    %99 = tpu.matmul %97, %98, %cst_30 {dimension_numbers = #tpu.dot_dimension_numbers<[1], [0], [0], [1], [0, 0, 1, 1], [], []>} : vector<16x256xf32>, vector<256x32xf32>, vector<16x32xf32> -> vector<16x32xf32>
    %100 = vector.broadcast %9 : vector<1x32xf32> to vector<16x32xf32>
    %101 = arith.addf %99, %100 : vector<16x32xf32>
    %102 = arith.addf %101, %92 : vector<16x32xf32>
    %cst_31 = arith.constant dense<0.000000e+00> : vector<16xf32>
    %103 = vector.multi_reduction <add>, %102, %cst_31 [1] : vector<16x32xf32> to vector<16xf32>
    %104 = vector.shape_cast %103 : vector<16xf32> to vector<16x1xf32>
    %cst_32 = arith.constant 3.125000e-02 : f32
    %105 = vector.broadcast %cst_32 : f32 to vector<16x1xf32>
    %106 = arith.mulf %104, %105 : vector<16x1xf32>
    %107 = vector.broadcast %106 : vector<16x1xf32> to vector<16x32xf32>
    %108 = arith.subf %102, %107 : vector<16x32xf32>
    %109 = arith.mulf %108, %108 : vector<16x32xf32>
    %cst_33 = arith.constant dense<0.000000e+00> : vector<16xf32>
    %110 = vector.multi_reduction <add>, %109, %cst_33 [1] : vector<16x32xf32> to vector<16xf32>
    %111 = vector.shape_cast %110 : vector<16xf32> to vector<16x1xf32>
    %cst_34 = arith.constant 0.0322580636 : f32
    %112 = vector.broadcast %cst_34 : f32 to vector<16x1xf32>
    %113 = arith.mulf %111, %112 : vector<16x1xf32>
    %114 = vector.broadcast %10 : vector<1x32xf32> to vector<16x32xf32>
    %115 = arith.mulf %114, %108 : vector<16x32xf32>
    %116 = math.rsqrt %113 : vector<16x1xf32>
    %117 = vector.broadcast %116 : vector<16x1xf32> to vector<16x32xf32>
    %118 = arith.mulf %115, %117 : vector<16x32xf32>
    %119 = vector.broadcast %11 : vector<1x32xf32> to vector<16x32xf32>
    %120 = arith.addf %118, %119 : vector<16x32xf32>
    %c0_35 = arith.constant 0 : index
    %c0_36 = arith.constant 0 : index
    %121 = vector.load %arg3[%c0_35, %c0_36] : memref<16x32xf32, #tpu.memory_space<vmem>>, vector<16x32xf32>
    tpu.vector_store %arg3[%c0_35, %c0_36], %120 {strides = array<i32>} : memref<16x32xf32, #tpu.memory_space<vmem>>, vector<16x32xf32>,
    return
  }
}

</mosaic_0001>

<llo_original>
// kernel: tpu_custom_call.1
$region0: #{tpu_custom_call.1}
  #allocation0 [shape = 'u32[]', space=smem, size = 0x4, offset = 0x4, fixed_abs, tag = 'smem constant byte address 0x4 - core index']
  #allocation1 [shape = 'u32[72,128]{1,0:T(1,128)}', space=vmem, size = 0x9000, scoped, tag = 'internal scratch']
  %s0 = inlined_call_operand.vmem [shape: f32[16,32], index: 0, kind: input, shape index: {}]
  %s1 = inlined_call_operand.vmem [shape: f32[50,384], index: 1, kind: input, shape index: {}]
  %s2 = inlined_call_operand.vmem [shape: f32[256,32], index: 2, kind: input, shape index: {}]
  %s3 = inlined_call_operand.hbm [shape: f32[16,32], index: 3, kind: output, shape index: {}]
  %s4 = sld [smem:[#allocation0]]
  $region22: #{tpu_custom_call.1} parent=0
    _
  %s6 = ssub.s32 1, %s4
  %s7 = scalar_select 0, %s6, %s4
  $region1: #{tpu_custom_call.1} parent=0
    #allocation2 [shape = 'u8[8192]{0}', space=vmem, size = 0x2000, scoped, tag = 'output window, operand 0, single buffered']
    #allocation3 [shape = 's32[1]{0}', space=sflag, size = 0x4, scoped, tag = 'scoped memory for tpu_custom_call.1']
    %8 = vsyncpa [#allocation3], 0
    // Predicated region
    $region2: #{tpu_custom_call.1} parent=1 // pred_check
      _
    $region3: #{tpu_custom_call.1} parent=1 // pred_check_branch
      %10 = sbr.rel (0) target = $region5
    $region4: #{tpu_custom_call.1} parent=1 // pred_region
      _
    $region5: #{tpu_custom_call.1} parent=1 // pred_fallthru
      _
    // Predicated region
    $region6: #{tpu_custom_call.1} parent=1 // pred_check
      _
    $region7: #{tpu_custom_call.1} parent=1 // pred_check_branch
      %12 = sbr.rel (0) target = $region9
    $region8: #{tpu_custom_call.1} parent=1 // pred_region
      _
    $region9: #{tpu_custom_call.1} parent=1 // pred_fallthru
      _
    // Predicated region
    $region10: #{tpu_custom_call.1} parent=1 // pred_check
      _
    $region11: #{tpu_custom_call.1} parent=1 // pred_check_branch
      %14 = sbr.rel (0) target = $region13
    $region12: #{tpu_custom_call.1} parent=1 // pred_region
      _
    $region13: #{tpu_custom_call.1} parent=1 // pred_fallthru
      _
    %v15 = vld [vmem:[%s0] sm:$0xff]
    %v16 = vld [vmem:[%s0 + $0x8] sm:$0xff]
    %v17 = vld [vmem:[%s1] sm:$0xff]
    %v18 = vld [vmem:[%s1 + $0x18] sm:$0xff]
    %v19 = vld [vmem:[%s1 + $0x30] sm:$0xff]
    %v20 = vld [vmem:[%s1 + $0x48] sm:$0xff]
    %v21 = vld [vmem:[%s1 + $0x8] sm:$0xff]
    %v22 = vld [vmem:[%s1 + $0x10] sm:$0xff]
    %v23 = vld [vmem:[%s1 + $0x20] sm:$0xff]
    %v24 = vld [vmem:[%s1 + $0x28] sm:$0xff]
    %v25 = vld [vmem:[%s1 + $0x38] sm:$0xff]
    %v26 = vld [vmem:[%s1 + $0x40] sm:$0xff]
    %v27 = vld [vmem:[%s1 + $0x50] sm:$0xff]
    %v28 = vld [vmem:[%s1 + $0x58] sm:$0xff]
    %v29 = vld [vmem:[%s1 + $0x60] sm:$0xff]
    %v30 = vld [vmem:[%s1 + $0x78] sm:$0xff]
    %v31 = vld [vmem:[%s1 + $0x90] ss:$0 sm:$0xff]
    %v32 = vld [vmem:[%s1 + $0x98] ss:$0 sm:$0xff]
    %v33 = vld [vmem:[%s1 + $0xa0] ss:$0 sm:$0xff]
    %s34 = scalar_lea.vmem %s1, 145
    %v35 = vld [vmem:[%s34] ss:$8 sm:$0x3]
    %vm36 = vcmask 261120
    %v38 = vsel %vm36, %v15, 0
    %v41 = vsel %vm36, %v16, 0
    %43 = vmatpush.msra.mxu0 0.0
    %44 = vmatpush.msra.mxu0 0.0
    %45 = vmatpush.msra.mxu0 0.0
    %46 = vmatpush.msra.mxu0 0.0
    %47 = vmatpush.msra.mxu0 0.0
    %48 = vmatpush.msra.mxu0 0.0
    %49 = vmatpush.msra.mxu0 0.0
    %50 = vmatpush.msra.mxu0 0.0
    %51 = vmatpush.msra.mxu0 0.0
    %52 = vmatpush.msra.mxu0 0.0
    %53 = vmatpush.msra.mxu0 0.0
    %54 = vmatpush.msra.mxu0 0.0
    %55 = vmatpush.msra.mxu0 %v20
    %56 = vmatpush.msra.mxu0 %v19
    %57 = vmatpush.msra.mxu0 %v18
    %58 = vmatpush.msra.mxu0 %v17
    %59 = vmatmul.f32.gmra.mxu0 %v38
    %v60 = vpop.f32.mrf.mxu0
    %v61 = vadd.f32 %v31, %v60
    %62 = vmatmul.f32.gmra.mxu0 %v41
    %v63 = vpop.f32.mrf.mxu0
    %v64 = vadd.f32 %v31, %v63
    %65 = vdwg.mxu0
    %68 = vrot.lane.b32.xlu0 %v61, 120
    %v69 = vpop.permute.xlu0 %68
    %70 = vrot.lane.b32.xlu0 %v64, 120
    %v71 = vpop.permute.xlu0 %70
    %72 = vrot.lane.b32.xlu0 %v61, 112
    %v73 = vpop.permute.xlu0 %72
    %74 = vrot.lane.b32.xlu0 %v64, 112
    %v75 = vpop.permute.xlu0 %74
    %76 = vrot.lane.b32.xlu0 %v61, 104
    %v77 = vpop.permute.xlu0 %76
    %78 = vrot.lane.b32.xlu0 %v64, 104
    %v79 = vpop.permute.xlu0 %78
    %80 = vrot.lane.b32.xlu0 %v61, 96
    %v81 = vpop.permute.xlu0 %80
    %82 = vrot.lane.b32.xlu0 %v64, 96
    %v83 = vpop.permute.xlu0 %82
    %86 = vxpose.xlu0.b32.start [1/16] %v81, 128
    %87 = vxpose.xlu0.b32.cont [2/16] %v83, 128
    %88 = vxpose.xlu0.b32.cont [3/16] 0.0, 128
    %89 = vxpose.xlu0.b32.cont [4/16] 0.0, 128
    %90 = vxpose.xlu0.b32.cont [5/16] 0.0, 128
    %91 = vxpose.xlu0.b32.cont [6/16] 0.0, 128
    %92 = vxpose.xlu0.b32.cont [7/16] 0.0, 128
    %93 = vxpose.xlu0.b32.cont [8/16] 0.0, 128
    %94 = vxpose.xlu0.b32.cont [9/16] 0.0, 128
    %95 = vxpose.xlu0.b32.cont [10/16] 0.0, 128
    %96 = vxpose.xlu0.b32.cont [11/16] 0.0, 128
    %97 = vxpose.xlu0.b32.cont [12/16] 0.0, 128
    %98 = vxpose.xlu0.b32.cont [13/16] 0.0, 128
    %99 = vxpose.xlu0.b32.cont [14/16] 0.0, 128
    %100 = vxpose.xlu0.b32.cont [15/16] 0.0, 128
    %101 = vxpose.xlu0.b32.end [16/16] 0.0, 128
    %v102 = vpop.trf.xlu0
    %v103 = vpop.trf.xlu0
    %v104 = vpop.trf.xlu0
    %v105 = vpop.trf.xlu0
    %v106 = vpop.trf.xlu0
    %v107 = vpop.trf.xlu0
    %v108 = vpop.trf.xlu0
    %v109 = vpop.trf.xlu0
    %v110 = vpop.trf.xlu0
    %v111 = vpop.trf.xlu0
    %v112 = vpop.trf.xlu0
    %v113 = vpop.trf.xlu0
    %v114 = vpop.trf.xlu0
    %v115 = vpop.trf.xlu0
    %v116 = vpop.trf.xlu0
    %v117 = vpop.trf.xlu0
    %vm118 = vcmask 64512
    %v119 = vsel %vm118, %v61, 0
    %v121 = vsel %vm118, %v64, 0
    %123 = vmatpush.msra.mxu0 0.0
    %124 = vmatpush.msra.mxu0 0.0
    %125 = vmatpush.msra.mxu0 0.0
    %126 = vmatpush.msra.mxu0 0.0
    %127 = vmatpush.msra.mxu0 0.0
    %128 = vmatpush.msra.mxu0 0.0
    %129 = vmatpush.msra.mxu0 0.0
    %130 = vmatpush.msra.mxu0 0.0
    %131 = vmatpush.msra.mxu0 0.0
    %132 = vmatpush.msra.mxu0 0.0
    %133 = vmatpush.msra.mxu0 0.0
    %134 = vmatpush.msra.mxu0 0.0
    %135 = vmatpush.msra.mxu0 0.0
    %136 = vmatpush.msra.mxu0 0.0
    %137 = vmatpush.msra.mxu0 0.0
    %138 = vmatpush.msra.mxu0 %v102
    %139 = vmatmul.f32.gmra.mxu0 %v119
    %v140 = vpop.f32.mrf.mxu0
    %v141 = vadd.f32 0.0, %v140
    %142 = vmatmul.f32.gmra.mxu0 %v121
    %v143 = vpop.f32.mrf.mxu0
    %v144 = vadd.f32 0.0, %v143
    %145 = vdwg.mxu0
    %v146 = vsel %vm118, %v69, 0
    %v148 = vsel %vm118, %v71, 0
    %150 = vmatpush.msra.mxu0 0.0
    %151 = vmatpush.msra.mxu0 0.0
    %152 = vmatpush.msra.mxu0 0.0
    %153 = vmatpush.msra.mxu0 0.0
    %154 = vmatpush.msra.mxu0 0.0
    %155 = vmatpush.msra.mxu0 0.0
    %156 = vmatpush.msra.mxu0 0.0
    %157 = vmatpush.msra.mxu0 0.0
    %158 = vmatpush.msra.mxu0 0.0
    %159 = vmatpush.msra.mxu0 0.0
    %160 = vmatpush.msra.mxu0 0.0
    %161 = vmatpush.msra.mxu0 0.0
    %162 = vmatpush.msra.mxu0 0.0
    %163 = vmatpush.msra.mxu0 0.0
    %164 = vmatpush.msra.mxu0 0.0
    %165 = vmatpush.msra.mxu0 %v103
    %166 = vmatmul.f32.gmra.mxu0 %v146
    %v167 = vpop.f32.mrf.mxu0
    %v168 = vadd.f32 0.0, %v167
    %169 = vmatmul.f32.gmra.mxu0 %v148
    %v170 = vpop.f32.mrf.mxu0
    %v171 = vadd.f32 0.0, %v170
    %172 = vdwg.mxu0
    %v173 = vsel %vm118, %v73, 0
    %v175 = vsel %vm118, %v75, 0
    %177 = vmatpush.msra.mxu0 0.0
    %178 = vmatpush.msra.mxu0 0.0
    %179 = vmatpush.msra.mxu0 0.0
    %180 = vmatpush.msra.mxu0 0.0
    %181 = vmatpush.msra.mxu0 0.0
    %182 = vmatpush.msra.mxu0 0.0
    %183 = vmatpush.msra.mxu0 0.0
    %184 = vmatpush.msra.mxu0 0.0
    %185 = vmatpush.msra.mxu0 0.0
    %186 = vmatpush.msra.mxu0 0.0
    %187 = vmatpush.msra.mxu0 0.0
    %188 = vmatpush.msra.mxu0 0.0
    %189 = vmatpush.msra.mxu0 0.0
    %190 = vmatpush.msra.mxu0 0.0
    %191 = vmatpush.msra.mxu0 0.0
    %192 = vmatpush.msra.mxu0 %v104
    %193 = vmatmul.f32.gmra.mxu0 %v173
    %v194 = vpop.f32.mrf.mxu0
    %v195 = vadd.f32 0.0, %v194
    %196 = vmatmul.f32.gmra.mxu0 %v175
    %v197 = vpop.f32.mrf.mxu0
    %v198 = vadd.f32 0.0, %v197
    %199 = vdwg.mxu0
    %v200 = vsel %vm118, %v77, 0
    %v202 = vsel %vm118, %v79, 0
    %204 = vmatpush.msra.mxu0 0.0
    %205 = vmatpush.msra.mxu0 0.0
    %206 = vmatpush.msra.mxu0 0.0
    %207 = vmatpush.msra.mxu0 0.0
    %208 = vmatpush.msra.mxu0 0.0
    %209 = vmatpush.msra.mxu0 0.0
    %210 = vmatpush.msra.mxu0 0.0
    %211 = vmatpush.msra.mxu0 0.0
    %212 = vmatpush.msra.mxu0 0.0
    %213 = vmatpush.msra.mxu0 0.0
    %214 = vmatpush.msra.mxu0 0.0
    %215 = vmatpush.msra.mxu0 0.0
    %216 = vmatpush.msra.mxu0 0.0
    %217 = vmatpush.msra.mxu0 0.0
    %218 = vmatpush.msra.mxu0 0.0
    %219 = vmatpush.msra.mxu0 %v105
    %220 = vmatmul.f32.gmra.mxu0 %v200
    %v221 = vpop.f32.mrf.mxu0
    %v222 = vadd.f32 0.0, %v221
    %223 = vmatmul.f32.gmra.mxu0 %v202
    %v224 = vpop.f32.mrf.mxu0
    %v225 = vadd.f32 0.0, %v224
    %226 = vdwg.mxu0
    %v227 = vmul.f32 %v141, 0.35355338
    %v228 = vmul.f32 %v144, 0.35355338
    %v229 = vmul.f32 %v168, 0.35355338
    %v230 = vmul.f32 %v171, 0.35355338
    %v231 = vmul.f32 %v195, 0.35355338
    %v232 = vmul.f32 %v198, 0.35355338
    %v233 = vmul.f32 %v222, 0.35355338
    %v234 = vmul.f32 %v225, 0.35355338
    %vm235 = vcmask 130048
    %v236 = vsel %vm235, %v227, -inf
    %v237 = vsel %vm235, %v229, -inf
    %v238 = vsel %vm235, %v231, -inf
    %v239 = vmax.f32 %v236, %v238
    %v240 = vsel %vm235, %v233, -inf
    %v241 = vmax.f32 %v237, %v240
    %v242 = vmax.f32 %v239, %v241
    %v243 = vsel %vm235, %v228, -inf
    %v244 = vsel %vm235, %v230, -inf
    %v245 = vsel %vm235, %v232, -inf
    %v246 = vmax.f32 %v243, %v245
    %v247 = vsel %vm235, %v234, -inf
    %v248 = vmax.f32 %v244, %v247
    %v249 = vmax.f32 %v246, %v248
    %v250 = vsub.f32 %v227, %v242
    %v251 = vsub.f32 %v228, %v249
    %v252 = vsub.f32 %v229, %v242
    %v253 = vsub.f32 %v230, %v249
    %v254 = vsub.f32 %v231, %v242
    %v255 = vsub.f32 %v232, %v249
    %v256 = vsub.f32 %v233, %v242
    %v257 = vsub.f32 %v234, %v249
    %v258 = vmul.f32 %v250, 1.442695
    %v259 = vpow.pop %v258
    %v260 = vmul.f32 %v251, 1.442695
    %v261 = vpow.pop %v260
    %v262 = vmul.f32 %v252, 1.442695
    %v263 = vpow.pop %v262
    %v264 = vmul.f32 %v253, 1.442695
    %v265 = vpow.pop %v264
    %v266 = vmul.f32 %v254, 1.442695
    %v267 = vpow.pop %v266
    %v268 = vmul.f32 %v255, 1.442695
    %v269 = vpow.pop %v268
    %v270 = vmul.f32 %v256, 1.442695
    %v271 = vpow.pop %v270
    %v272 = vmul.f32 %v257, 1.442695
    %v273 = vpow.pop %v272
    %v274 = vsel %vm235, %v259, 0.0
    %v275 = vsel %vm235, %v263, 0.0
    %v276 = vadd.f32 %v274, %v275
    %v277 = vsel %vm235, %v267, 0.0
    %v278 = vadd.f32 %v276, %v277
    %v279 = vsel %vm235, %v271, 0.0
    %v280 = vadd.f32 %v278, %v279
    %v281 = vsel %vm235, %v261, 0.0
    %v282 = vsel %vm235, %v265, 0.0
    %v283 = vadd.f32 %v281, %v282
    %v284 = vsel %vm235, %v269, 0.0
    %v285 = vadd.f32 %v283, %v284
    %v286 = vsel %vm235, %v273, 0.0
    %v287 = vadd.f32 %v285, %v286
    %v288 = vrcp.pop %v280
    %v289 = vmul.f32 %v280, %v288
    %v290 = vsub.f32 1.0, %v289
    %v291 = vmul.f32 %v288, %v290
    %v292 = vadd.f32 %v288, %v291
    %vm293 = vweird.f32 %v280
    %vm294 = vweird.f32 %v288
    %vm295 = vmor %vm293, %vm294
    %v296 = vsel %vm295, %v288, %v292
    %v297 = vand.u32 2147483647, %v280
    %vm298 = vcmp.eq.f32.partialorder %v297, 8.507059e+37
    %v299 = vand.u32 %v280, 2147483648
    %v300 = vor.u32 1.1754944e-38, %v299
    %v301 = vsel %vm298, %v300, %v296
    %v302 = vrcp.pop %v287
    %v303 = vmul.f32 %v287, %v302
    %v304 = vsub.f32 1.0, %v303
    %v305 = vmul.f32 %v302, %v304
    %v306 = vadd.f32 %v302, %v305
    %vm307 = vweird.f32 %v287
    %vm308 = vweird.f32 %v302
    %vm309 = vmor %vm307, %vm308
    %v310 = vsel %vm309, %v302, %v306
    %v311 = vand.u32 2147483647, %v287
    %vm312 = vcmp.eq.f32.partialorder %v311, 8.507059e+37
    %v313 = vand.u32 %v287, 2147483648
    %v314 = vor.u32 1.1754944e-38, %v313
    %v315 = vsel %vm312, %v314, %v310
    %v316 = vmul.f32 %v301, %v29
    %v317 = vmul.f32 %v315, %v30
    %v318 = vmul.f32 %v259, %v316
    %v319 = vmul.f32 %v261, %v317
    %v320 = vmul.f32 %v263, %v316
    %v321 = vmul.f32 %v265, %v317
    %v322 = vmul.f32 %v267, %v316
    %v323 = vmul.f32 %v269, %v317
    %v324 = vmul.f32 %v271, %v316
    %v325 = vmul.f32 %v273, %v317
    %v327 = vsel %vm235, %v318, 0
    %v330 = vsel %vm235, %v319, 0
    %v333 = vsel %vm235, %v106, 0
    %335 = vmatpush.xpose.msra.mxu0 0.0
    %336 = vmatpush.xpose.msra.mxu0 0.0
    %337 = vmatpush.xpose.msra.mxu0 0.0
    %338 = vmatpush.xpose.msra.mxu0 0.0
    %339 = vmatpush.xpose.msra.mxu0 0.0
    %340 = vmatpush.xpose.msra.mxu0 0.0
    %341 = vmatpush.xpose.msra.mxu0 0.0
    %342 = vmatpush.xpose.msra.mxu0 0.0
    %343 = vmatpush.xpose.msra.mxu0 0.0
    %344 = vmatpush.xpose.msra.mxu0 0.0
    %345 = vmatpush.xpose.msra.mxu0 0.0
    %346 = vmatpush.xpose.msra.mxu0 0.0
    %347 = vmatpush.xpose.msra.mxu0 0.0
    %348 = vmatpush.xpose.msra.mxu0 0.0
    %349 = vmatpush.xpose.msra.mxu0 0.0
    %350 = vmatpush.xpose.msra.mxu0 %v333
    %351 = vmatmul.f32.gmra.mxu0 %v327
    %v352 = vpop.f32.mrf.mxu0
    %v353 = vadd.f32 0.0, %v352
    %354 = vmatmul.f32.gmra.mxu0 %v330
    %v355 = vpop.f32.mrf.mxu0
    %v356 = vadd.f32 0.0, %v355
    %357 = vdwg.mxu0
    %v359 = vsel %vm235, %v320, 0
    %v362 = vsel %vm235, %v321, 0
    %v365 = vsel %vm235, %v107, 0
    %367 = vmatpush.xpose.msra.mxu0 0.0
    %368 = vmatpush.xpose.msra.mxu0 0.0
    %369 = vmatpush.xpose.msra.mxu0 0.0
    %370 = vmatpush.xpose.msra.mxu0 0.0
    %371 = vmatpush.xpose.msra.mxu0 0.0
    %372 = vmatpush.xpose.msra.mxu0 0.0
    %373 = vmatpush.xpose.msra.mxu0 0.0
    %374 = vmatpush.xpose.msra.mxu0 0.0
    %375 = vmatpush.xpose.msra.mxu0 0.0
    %376 = vmatpush.xpose.msra.mxu0 0.0
    %377 = vmatpush.xpose.msra.mxu0 0.0
    %378 = vmatpush.xpose.msra.mxu0 0.0
    %379 = vmatpush.xpose.msra.mxu0 0.0
    %380 = vmatpush.xpose.msra.mxu0 0.0
    %381 = vmatpush.xpose.msra.mxu0 0.0
    %382 = vmatpush.xpose.msra.mxu0 %v365
    %383 = vmatmul.f32.gmra.mxu0 %v359
    %v384 = vpop.f32.mrf.mxu0
    %v385 = vadd.f32 0.0, %v384
    %386 = vmatmul.f32.gmra.mxu0 %v362
    %v387 = vpop.f32.mrf.mxu0
    %v388 = vadd.f32 0.0, %v387
    %389 = vdwg.mxu0
    %v391 = vsel %vm235, %v322, 0
    %v394 = vsel %vm235, %v323, 0
    %v397 = vsel %vm235, %v108, 0
    %399 = vmatpush.xpose.msra.mxu0 0.0
    %400 = vmatpush.xpose.msra.mxu0 0.0
    %401 = vmatpush.xpose.msra.mxu0 0.0
    %402 = vmatpush.xpose.msra.mxu0 0.0
    %403 = vmatpush.xpose.msra.mxu0 0.0
    %404 = vmatpush.xpose.msra.mxu0 0.0
    %405 = vmatpush.xpose.msra.mxu0 0.0
    %406 = vmatpush.xpose.msra.mxu0 0.0
    %407 = vmatpush.xpose.msra.mxu0 0.0
    %408 = vmatpush.xpose.msra.mxu0 0.0
    %409 = vmatpush.xpose.msra.mxu0 0.0
    %410 = vmatpush.xpose.msra.mxu0 0.0
    %411 = vmatpush.xpose.msra.mxu0 0.0
    %412 = vmatpush.xpose.msra.mxu0 0.0
    %413 = vmatpush.xpose.msra.mxu0 0.0
    %414 = vmatpush.xpose.msra.mxu0 %v397
    %415 = vmatmul.f32.gmra.mxu0 %v391
    %v416 = vpop.f32.mrf.mxu0
    %v417 = vadd.f32 0.0, %v416
    %418 = vmatmul.f32.gmra.mxu0 %v394
    %v419 = vpop.f32.mrf.mxu0
    %v420 = vadd.f32 0.0, %v419
    %421 = vdwg.mxu0
    %v423 = vsel %vm235, %v324, 0
    %v426 = vsel %vm235, %v325, 0
    %v429 = vsel %vm235, %v109, 0
    %431 = vmatpush.xpose.msra.mxu0 0.0
    %432 = vmatpush.xpose.msra.mxu0 0.0
    %433 = vmatpush.xpose.msra.mxu0 0.0
    %434 = vmatpush.xpose.msra.mxu0 0.0
    %435 = vmatpush.xpose.msra.mxu0 0.0
    %436 = vmatpush.xpose.msra.mxu0 0.0
    %437 = vmatpush.xpose.msra.mxu0 0.0
    %438 = vmatpush.xpose.msra.mxu0 0.0
    %439 = vmatpush.xpose.msra.mxu0 0.0
    %440 = vmatpush.xpose.msra.mxu0 0.0
    %441 = vmatpush.xpose.msra.mxu0 0.0
    %442 = vmatpush.xpose.msra.mxu0 0.0
    %443 = vmatpush.xpose.msra.mxu0 0.0
    %444 = vmatpush.xpose.msra.mxu0 0.0
    %445 = vmatpush.xpose.msra.mxu0 0.0
    %446 = vmatpush.xpose.msra.mxu0 %v429
    %447 = vmatmul.f32.gmra.mxu0 %v423
    %v448 = vpop.f32.mrf.mxu0
    %v449 = vadd.f32 0.0, %v448
    %450 = vmatmul.f32.gmra.mxu0 %v426
    %v451 = vpop.f32.mrf.mxu0
    %v452 = vadd.f32 0.0, %v451
    %453 = vdwg.mxu0
    %456 = vrot.lane.b32.xlu0 %v385, 8
    %v457 = vpop.permute.xlu0 %456
    %458 = vrot.lane.b32.xlu0 %v388, 8
    %v459 = vpop.permute.xlu0 %458
    %464 = vrot.lane.b32.xlu0 %v417, 16
    %v465 = vpop.permute.xlu0 %464
    %466 = vrot.lane.b32.xlu0 %v420, 16
    %v467 = vpop.permute.xlu0 %466
    %472 = vrot.lane.b32.xlu0 %v449, 24
    %v473 = vpop.permute.xlu0 %472
    %474 = vrot.lane.b32.xlu0 %v452, 24
    %v475 = vpop.permute.xlu0 %474
    %v478 = vsel %vm118, %v353, %v457
    %v479 = vsel %vm118, %v356, %v459
    %v480 = vsel %vm235, %v478, %v465
    %v481 = vsel %vm235, %v479, %v467
    %vm482 = vcmask 195584
    %v483 = vsel %vm482, %v480, %v473
    %v484 = vsel %vm482, %v481, %v475
    %489 = vrot.lane.b32.xlu0 %v17, 32
    %v490 = vpop.permute.xlu0 %489
    %491 = vrot.lane.b32.xlu0 %v18, 32
    %v492 = vpop.permute.xlu0 %491
    %493 = vrot.lane.b32.xlu0 %v19, 32
    %v494 = vpop.permute.xlu0 %493
    %495 = vrot.lane.b32.xlu0 %v20, 32
    %v496 = vpop.permute.xlu0 %495
    %502 = vrot.lane.b32.xlu0 %v31, 32
    %v503 = vpop.permute.xlu0 %502
    %v506 = vsel %vm36, %v483, 0
    %v509 = vsel %vm36, %v484, 0
    %511 = vmatpush.msra.mxu0 0.0
    %512 = vmatpush.msra.mxu0 0.0
    %513 = vmatpush.msra.mxu0 0.0
    %514 = vmatpush.msra.mxu0 0.0
    %515 = vmatpush.msra.mxu0 0.0
    %516 = vmatpush.msra.mxu0 0.0
    %517 = vmatpush.msra.mxu0 0.0
    %518 = vmatpush.msra.mxu0 0.0
    %519 = vmatpush.msra.mxu0 0.0
    %520 = vmatpush.msra.mxu0 0.0
    %521 = vmatpush.msra.mxu0 0.0
    %522 = vmatpush.msra.mxu0 0.0
    %523 = vmatpush.msra.mxu0 %v496
    %524 = vmatpush.msra.mxu0 %v494
    %525 = vmatpush.msra.mxu0 %v492
    %526 = vmatpush.msra.mxu0 %v490
    %527 = vmatmul.f32.gmra.mxu0 %v506
    %v528 = vpop.f32.mrf.mxu0
    %v529 = vadd.f32 %v503, %v528
    %530 = vmatmul.f32.gmra.mxu0 %v509
    %v531 = vpop.f32.mrf.mxu0
    %v532 = vadd.f32 %v503, %v531
    %533 = vdwg.mxu0
    %v534 = vadd.f32 %v529, %v15
    %v535 = vadd.f32 %v532, %v16
    %v536 = vsel %vm36, %v534, 0.0
    %537 = vadd.xlane.f32.xlu0 %v536
    %v538 = vpop.xlane.xlu0 %537
    %v539 = vsel %vm36, %v535, 0.0
    %540 = vadd.xlane.f32.xlu0 %v539
    %v541 = vpop.xlane.xlu0 %540
    %v542 = vmul.f32 %v538, 0.03125
    %v543 = vmul.f32 %v541, 0.03125
    %v544 = vsub.f32 %v534, %v542
    %v545 = vsub.f32 %v535, %v543
    %v546 = vmul.f32 %v544, %v544
    %v547 = vmul.f32 %v545, %v545
    %v548 = vsel %vm36, %v546, 0.0
    %549 = vadd.xlane.f32.xlu0 %v548
    %v550 = vpop.xlane.xlu0 %549
    %v551 = vsel %vm36, %v547, 0.0
    %552 = vadd.xlane.f32.xlu0 %v551
    %v553 = vpop.xlane.xlu0 %552
    %v554 = vmul.f32 %v550, 0.032258064
    %v555 = vmul.f32 %v553, 0.032258064
    %v556 = vmul.f32 %v32, %v544
    %v557 = vmul.f32 %v32, %v545
    %v558 = vrsqrt.pop %v554
    %v559 = vmul.f32 %v558, %v554
    %v560 = vmul.f32 %v559, %v558
    %v561 = vmul.f32 0.5, %v560
    %v562 = vsub.f32 1.5, %v561
    %v563 = vmul.f32 %v558, %v562
    %vm564 = vweird.f32 %v554
    %vm565 = vweird.f32 %v558
    %vm566 = vmor %vm564, %vm565
    %v567 = vsel %vm566, %v558, %v563
    %v568 = vrsqrt.pop %v555
    %v569 = vmul.f32 %v568, %v555
    %v570 = vmul.f32 %v569, %v568
    %v571 = vmul.f32 0.5, %v570
    %v572 = vsub.f32 1.5, %v571
    %v573 = vmul.f32 %v568, %v572
    %vm574 = vweird.f32 %v555
    %vm575 = vweird.f32 %v568
    %vm576 = vmor %vm574, %vm575
    %v577 = vsel %vm576, %v568, %v573
    %v578 = vmul.f32 %v556, %v567
    %v579 = vmul.f32 %v557, %v577
    %581 = vrot.lane.b32.xlu0 %v32, 96
    %v582 = vpop.permute.xlu0 %581
    %v584 = vadd.f32 %v578, %v582
    %v585 = vadd.f32 %v579, %v582
    %v587 = vperm.slane %v35, 0
    %v588 = vperm.slane %v35, 1
    %v592 = vsel %vm36, %v584, 0
    %v595 = vsel %vm36, %v585, 0
    %597 = vmatpush.msra.mxu0 0.0
    %598 = vmatpush.msra.mxu0 0.0
    %599 = vmatpush.msra.mxu0 0.0
    %600 = vmatpush.msra.mxu0 0.0
    %601 = vmatpush.msra.mxu0 0.0
    %602 = vmatpush.msra.mxu0 0.0
    %603 = vmatpush.msra.mxu0 0.0
    %604 = vmatpush.msra.mxu0 0.0
    %605 = vmatpush.msra.mxu0 0.0
    %606 = vmatpush.msra.mxu0 0.0
    %607 = vmatpush.msra.mxu0 0.0
    %608 = vmatpush.msra.mxu0 0.0
    %609 = vmatpush.msra.mxu0 %v27
    %610 = vmatpush.msra.mxu0 %v25
    %611 = vmatpush.msra.mxu0 %v23
    %612 = vmatpush.msra.mxu0 %v21
    %613 = vmatmul.f32.gmra.mxu0 %v592
    %v614 = vpop.f32.mrf.mxu0
    %v615 = vadd.f32 %v587, %v614
    %616 = vmatmul.f32.gmra.mxu0 %v595
    %v617 = vpop.f32.mrf.mxu0
    %v618 = vadd.f32 %v587, %v617
    %619 = vdwg.mxu0
    %620 = vmatpush.msra.mxu0 0.0
    %621 = vmatpush.msra.mxu0 0.0
    %622 = vmatpush.msra.mxu0 0.0
    %623 = vmatpush.msra.mxu0 0.0
    %624 = vmatpush.msra.mxu0 0.0
    %625 = vmatpush.msra.mxu0 0.0
    %626 = vmatpush.msra.mxu0 0.0
    %627 = vmatpush.msra.mxu0 0.0
    %628 = vmatpush.msra.mxu0 0.0
    %629 = vmatpush.msra.mxu0 0.0
    %630 = vmatpush.msra.mxu0 0.0
    %631 = vmatpush.msra.mxu0 0.0
    %632 = vmatpush.msra.mxu0 %v28
    %633 = vmatpush.msra.mxu0 %v26
    %634 = vmatpush.msra.mxu0 %v24
    %635 = vmatpush.msra.mxu0 %v22
    %636 = vmatmul.f32.gmra.mxu0 %v592
    %v637 = vpop.f32.mrf.mxu0
    %v638 = vadd.f32 %v588, %v637
    %639 = vmatmul.f32.gmra.mxu0 %v595
    %v640 = vpop.f32.mrf.mxu0
    %v641 = vadd.f32 %v588, %v640
    %642 = vdwg.mxu0
    %v643 = vmax.f32 %v615, 0.0
    %v644 = vmax.f32 %v638, 0.0
    %v645 = vmax.f32 %v618, 0.0
    %v646 = vmax.f32 %v641, 0.0
    %v647 = vld [vmem:[%s2] sm:$0xff]
    %v648 = vld [vmem:[%s2 + $0x8] sm:$0xff]
    %v649 = vld [vmem:[%s2 + $0x10] sm:$0xff]
    %v650 = vld [vmem:[%s2 + $0x18] sm:$0xff]
    %v651 = vld [vmem:[%s2 + $0x20] sm:$0xff]
    %v652 = vld [vmem:[%s2 + $0x28] sm:$0xff]
    %v653 = vld [vmem:[%s2 + $0x30] sm:$0xff]
    %v654 = vld [vmem:[%s2 + $0x38] sm:$0xff]
    %v655 = vld [vmem:[%s2 + $0x40] sm:$0xff]
    %v656 = vld [vmem:[%s2 + $0x48] sm:$0xff]
    %v657 = vld [vmem:[%s2 + $0x50] sm:$0xff]
    %v658 = vld [vmem:[%s2 + $0x58] sm:$0xff]
    %v659 = vld [vmem:[%s2 + $0x60] sm:$0xff]
    %v660 = vld [vmem:[%s2 + $0x68] sm:$0xff]
    %v661 = vld [vmem:[%s2 + $0x70] sm:$0xff]
    %v662 = vld [vmem:[%s2 + $0x78] sm:$0xff]
    %v663 = vld [vmem:[%s2 + $0x80] sm:$0xff]
    %v664 = vld [vmem:[%s2 + $0x88] sm:$0xff]
    %v665 = vld [vmem:[%s2 + $0x90] sm:$0xff]
    %v666 = vld [vmem:[%s2 + $0x98] sm:$0xff]
    %v667 = vld [vmem:[%s2 + $0xa0] sm:$0xff]
    %v668 = vld [vmem:[%s2 + $0xa8] sm:$0xff]
    %v669 = vld [vmem:[%s2 + $0xb0] sm:$0xff]
    %v670 = vld [vmem:[%s2 + $0xb8] sm:$0xff]
    %v671 = vld [vmem:[%s2 + $0xc0] sm:$0xff]
    %v672 = vld [vmem:[%s2 + $0xc8] sm:$0xff]
    %v673 = vld [vmem:[%s2 + $0xd0] sm:$0xff]
    %v674 = vld [vmem:[%s2 + $0xd8] sm:$0xff]
    %v675 = vld [vmem:[%s2 + $0xe0] sm:$0xff]
    %v676 = vld [vmem:[%s2 + $0xe8] sm:$0xff]
    %v677 = vld [vmem:[%s2 + $0xf0] sm:$0xff]
    %v678 = vld [vmem:[%s2 + $0xf8] sm:$0xff]
    %679 = vrot.lane.b32.xlu0 %v32, 64
    %v680 = vpop.permute.xlu0 %679
    %682 = vmatpush.msra.mxu0 %v662
    %683 = vmatpush.msra.mxu0 %v661
    %684 = vmatpush.msra.mxu0 %v660
    %685 = vmatpush.msra.mxu0 %v659
    %686 = vmatpush.msra.mxu0 %v658
    %687 = vmatpush.msra.mxu0 %v657
    %688 = vmatpush.msra.mxu0 %v656
    %689 = vmatpush.msra.mxu0 %v655
    %690 = vmatpush.msra.mxu0 %v654
    %691 = vmatpush.msra.mxu0 %v653
    %692 = vmatpush.msra.mxu0 %v652
    %693 = vmatpush.msra.mxu0 %v651
    %694 = vmatpush.msra.mxu0 %v650
    %695 = vmatpush.msra.mxu0 %v649
    %696 = vmatpush.msra.mxu0 %v648
    %697 = vmatpush.msra.mxu0 %v647
    %698 = vmatmul.f32.gmra.mxu0 %v643
    %v699 = vpop.f32.mrf.mxu0
    %v700 = vadd.f32 %v680, %v699
    %701 = vmatmul.f32.gmra.mxu0 %v645
    %v702 = vpop.f32.mrf.mxu0
    %v703 = vadd.f32 %v680, %v702
    %704 = vdwg.mxu0
    %705 = vmatpush.msra.mxu0 %v678
    %706 = vmatpush.msra.mxu0 %v677
    %707 = vmatpush.msra.mxu0 %v676
    %708 = vmatpush.msra.mxu0 %v675
    %709 = vmatpush.msra.mxu0 %v674
    %710 = vmatpush.msra.mxu0 %v673
    %711 = vmatpush.msra.mxu0 %v672
    %712 = vmatpush.msra.mxu0 %v671
    %713 = vmatpush.msra.mxu0 %v670
    %714 = vmatpush.msra.mxu0 %v669
    %715 = vmatpush.msra.mxu0 %v668
    %716 = vmatpush.msra.mxu0 %v667
    %717 = vmatpush.msra.mxu0 %v666
    %718 = vmatpush.msra.mxu0 %v665
    %719 = vmatpush.msra.mxu0 %v664
    %720 = vmatpush.msra.mxu0 %v663
    %721 = vmatmul.f32.gmra.mxu0 %v644
    %v722 = vpop.f32.mrf.mxu0
    %v723 = vadd.f32 %v700, %v722
    %724 = vmatmul.f32.gmra.mxu0 %v646
    %v725 = vpop.f32.mrf.mxu0
    %v726 = vadd.f32 %v703, %v725
    %727 = vdwg.mxu0
    %v728 = vadd.f32 %v723, %v584
    %v729 = vadd.f32 %v726, %v585
    %v730 = vsel %vm36, %v728, 0.0
    %731 = vadd.xlane.f32.xlu0 %v730
    %v732 = vpop.xlane.xlu0 %731
    %v733 = vsel %vm36, %v729, 0.0
    %734 = vadd.xlane.f32.xlu0 %v733
    %v735 = vpop.xlane.xlu0 %734
    %v736 = vmul.f32 %v732, 0.03125
    %v737 = vmul.f32 %v735, 0.03125
    %v738 = vsub.f32 %v728, %v736
    %v739 = vsub.f32 %v729, %v737
    %v740 = vmul.f32 %v738, %v738
    %v741 = vmul.f32 %v739, %v739
    %v742 = vsel %vm36, %v740, 0.0
    %743 = vadd.xlane.f32.xlu0 %v742
    %v744 = vpop.xlane.xlu0 %743
    %v745 = vsel %vm36, %v741, 0.0
    %746 = vadd.xlane.f32.xlu0 %v745
    %v747 = vpop.xlane.xlu0 %746
    %v748 = vmul.f32 %v744, 0.032258064
    %v749 = vmul.f32 %v747, 0.032258064
    %752 = vrot.lane.b32.xlu0 %v738, 96
    %v753 = vpop.permute.xlu0 %752
    %754 = vrot.lane.b32.xlu0 %v739, 96
    %v755 = vpop.permute.xlu0 %754
    %v758 = vmul.f32 %v32, %v753
    %v759 = vmul.f32 %v32, %v755
    %v760 = vrsqrt.pop %v748
    %v761 = vmul.f32 %v760, %v748
    %v762 = vmul.f32 %v761, %v760
    %v763 = vmul.f32 0.5, %v762
    %v764 = vsub.f32 1.5, %v763
    %v765 = vmul.f32 %v760, %v764
    %vm766 = vweird.f32 %v748
    %vm767 = vweird.f32 %v760
    %vm768 = vmor %vm766, %vm767
    %v769 = vsel %vm768, %v760, %v765
    %v770 = vrsqrt.pop %v749
    %v771 = vmul.f32 %v770, %v749
    %v772 = vmul.f32 %v771, %v770
    %v773 = vmul.f32 0.5, %v772
    %v774 = vsub.f32 1.5, %v773
    %v775 = vmul.f32 %v770, %v774
    %vm776 = vweird.f32 %v749
    %vm777 = vweird.f32 %v770
    %vm778 = vmor %vm776, %vm777
    %v779 = vsel %vm778, %v770, %v775
    %v780 = vmul.f32 %v758, %v769
    %v781 = vmul.f32 %v759, %v779
    %783 = vrot.lane.b32.xlu0 %v33, 96
    %v784 = vpop.permute.xlu0 %783
    %v786 = vadd.f32 %v780, %v784
    %v787 = vadd.f32 %v781, %v784
    %790 = vrot.lane.b32.xlu0 %v786, 32
    %v791 = vpop.permute.xlu0 %790
    %792 = vrot.lane.b32.xlu0 %v787, 32
    %v793 = vpop.permute.xlu0 %792
    %796 = vst.msk [vmem:[#allocation2] sm:$0xff] %vm36, %v791
    %797 = vst.msk [vmem:[#allocation2 + $0x8] sm:$0xff] %vm36, %v793
    // Predicated region
    $region14: #{tpu_custom_call.1} parent=1 // pred_check
      _
    $region15: #{tpu_custom_call.1} parent=1 // pred_check_branch
      %799 = sbr.rel (0) target = $region17
    $region16: #{tpu_custom_call.1} parent=1 // pred_region
      %801 = vsyncadd [#allocation3], 0
      %s802 = sshll.u32 [#allocation2], 4
      %s803 = int_to_ptr.vmem [resolvable:$true] %s802
      %s804 = sshll.u32 %s3, 4
      %s805 = int_to_ptr.hbm [resolvable:$true] %s804
      %810 = dma.vmem_to_hbm [thread:$0]  %s803, 256, %s805, [#allocation3], 128, 128, 8
    $region17: #{tpu_custom_call.1} parent=1 // pred_fallthru
      _
    // Predicated region
    $region18: #{tpu_custom_call.1} parent=1 // pred_check
      _
    $region19: #{tpu_custom_call.1} parent=1 // pred_check_branch
      %812 = sbr.rel (0) target = $region21
    $region20: #{tpu_custom_call.1} parent=1 // pred_region
      %814 = dma.done [#allocation3], 256
    $region21: #{tpu_custom_call.1} parent=1 // pred_fallthru
      _
    %815 = vsyncpa [#allocation3], 1

</llo_original>
